<compile_context>
chip_gen: v6e
topology: v6e:2x2x1
jax: 0.10.0
libtpu: 0.0.40
codegen_flags: <defaults>
</compile_context>

<pallas_src>
import functools

import jax
import jax.numpy as jnp
from jax import lax
from jax.experimental import pallas as pl
from jax.experimental.pallas import tpu as pltpu


def _round_up(n: int, m: int) -> int:
    return ((n + m - 1) // m) * m


def ct_loss_kernel(x1_ref, x2_ref, w1_ref, b1_ref, w2_ref, b2_ref, y_ref,
                   out_ref, *, batch: int, block_rows: int):
    """One batch tile -> one f32 partial BCEWithLogits sum.

    x*_ref : (TB, H)    activation tiles (streamed, double buffered)
    w*_ref : (H, Dp)    encoder weights (VMEM resident, constant index map)
    b*_ref : (1, Dp)    encoder biases  (VMEM resident)
    y_ref  : (1, 1, TB) labels, lane-dense, zero padded past `batch`
    out_ref: (1, 1, 1)  per-tile partial of the 'sum' reduction
    """
    i = pl.program_id(0)

    # Encoder forward passes on the MXU (f32 accumulation regardless of the
    # streaming dtype; bf16 x/W feeds the MXU at full rate on v5e/v6e/v7x).
    reps1 = jnp.dot(x1_ref[...], w1_ref[...],
                    preferred_element_type=jnp.float32) + b1_ref[...]
    reps2 = jnp.dot(x2_ref[...], w2_ref[...],
                    preferred_element_type=jnp.float32) + b2_ref[...]

    # Row-wise dot sim[i] = <reps1[i], reps2[i]>, produced directly in a
    # lane-dense (1, TB) layout:  ones(8, Dp) @ prod^T  (attention-style NT
    # matmul on the MXU; row 0 sliced out).  This keeps all following
    # element-wise / transcendental BCE math on full 128-lane vregs instead of
    # a (TB, 1) column with one valid lane per vreg.
    prod = reps1 * reps2                                        # (TB, Dp) f32
    ones = jnp.ones((8, prod.shape[1]), jnp.float32)
    sim = lax.dot_general(
        ones, prod, (((1,), (1,)), ((), ())),
        preferred_element_type=jnp.float32)[0:1, :]             # (1, TB)

    y = y_ref[0]                                                # (1, TB) f32

    # Mask rows past the true batch: the last tile may cover rows >= batch and
    # its x-block then holds unspecified data (x is NOT padded in the wrapper).
    lane = lax.broadcasted_iota(jnp.int32, sim.shape, 1)
    valid = (i * block_rows + lane) < batch

    # BCEWithLogitsLoss, numerically stable element-wise form (lane-dense).
    bce = (jnp.maximum(sim, 0.0) - sim * y
           + jnp.log1p(jnp.exp(-jnp.abs(sim))))
    bce = jnp.where(valid, bce, 0.0)

    # Single f32 per grid step; the 'sum' reduction finishes in the wrapper
    # over num_tiles partials.  No (TB,1) masked stores / HBM writeback.
    out_ref[...] = jnp.reshape(jnp.sum(bce), (1, 1, 1))


def contrastive_tension_loss(x1, x2, w1, b1, w2, b2, labels, *,
                             block_b: int = 512, matmul_dtype=None):
    """ContrastiveTension loss with a linear sentence encoder.

    x1, x2 : [B, H]   features for model1 / model2
    w*     : [H, D]   encoder weight (model2 starts as a copy of model1)
    b*     : [D] or [1, D]
    labels : [B] or [B, 1]

    block_b      : max batch-tile size.  ~512 on v6e (128 MiB VMEM), ~256 on
                   v7x (64 MiB VMEM, 2 TCs), 128-256 on v5e.
    matmul_dtype : e.g. jnp.bfloat16 -- full-rate MXU and half the x/W HBM
                   bytes on all of v5e/v6e/v7x.  Prefer passing x1/x2 already
                   in bf16 from the producer so the cast here is a no-op
                   (avoids an extra HBM read+write pass over the activations).
    """
    B, H = x1.shape
    D = w1.shape[1]

    if matmul_dtype is not None:
        if x1.dtype != matmul_dtype:
            x1 = x1.astype(matmul_dtype)
            x2 = x2.astype(matmul_dtype)
        w1 = w1.astype(matmul_dtype)
        w2 = w2.astype(matmul_dtype)

    # Pad the embedding dim to the 128-lane width (zero weight/bias columns do
    # not change sim).  Only the small weight/bias arrays are touched; the big
    # x1/x2 activations are never copied in the wrapper.
    D_pad = _round_up(D, 128)
    b1 = jnp.reshape(b1, (1, D)).astype(jnp.float32)
    b2 = jnp.reshape(b2, (1, D)).astype(jnp.float32)
    if D_pad != D:
        w1 = jnp.pad(w1, ((0, 0), (0, D_pad - D)))
        w2 = jnp.pad(w2, ((0, 0), (0, D_pad - D)))
        b1 = jnp.pad(b1, ((0, 0), (0, D_pad - D)))
        b2 = jnp.pad(b2, ((0, 0), (0, D_pad - D)))

    # Batch tile: sublane aligned (16 rows for 16-bit activations).
    row_align = 16 if jnp.dtype(x1.dtype).itemsize == 2 else 8
    if B <= block_b:
        TB = B                                      # single tile == full dim
    else:
        TB = max(row_align, (block_b // row_align) * row_align)
    # v7x has 2 TensorCores: make the "parallel" batch axis actually splittable.
    if pl.cdiv(B, TB) == 1 and B >= 2 * row_align:
        TB = _round_up(pl.cdiv(B, 2), row_align)
    num_tiles = pl.cdiv(B, TB)

    # Labels are tiny: pad/reshape them to (num_tiles, 1, TB) so the kernel
    # sees them lane-dense (last dim = TB) without any in-kernel relayout.
    y = jnp.reshape(labels, (-1,)).astype(jnp.float32)
    if num_tiles * TB != B:
        y = jnp.pad(y, (0, num_tiles * TB - B))
    y = jnp.reshape(y, (num_tiles, 1, TB))

    xsize = jnp.dtype(x1.dtype).itemsize
    wsize = jnp.dtype(w1.dtype).itemsize

    # Explicit VMEM budget (defaults are only 16/32 MiB scoped): x tiles double
    # buffered + weights (assume double buffered to also cover the fallback) +
    # intermediate headroom.  Capped at 64 MiB so the same budget fits v7x;
    # raise the cap on v5e/v6e (128 MiB physical) for very large H*D.
    est = (2 * 2 * TB * H * xsize            # x1, x2 (double buffered)
           + 2 * 2 * H * D_pad * wsize       # w1, w2
           + 2 * 2 * D_pad * 4               # b1, b2
           + 2 * 2 * TB * 4                  # labels
           + 4 * TB * D_pad * 4              # reps1/reps2/prod headroom
           + (1 << 20))
    vmem_limit = int(min(max(2 * est, 16 << 20), 64 << 20))

    cost = pl.CostEstimate(
        flops=4 * B * H * D_pad + 2 * 8 * B * D_pad + 4 * B * D_pad,
        transcendentals=2 * B,
        bytes_accessed=(2 * B * H * xsize + 2 * H * D_pad * wsize
                        + 2 * D_pad * 4 + num_tiles * (TB + 1) * 4),
    )

    kernel = functools.partial(ct_loss_kernel, batch=B, block_rows=TB)
    compiler_params = pltpu.CompilerParams(
        dimension_semantics=("parallel",),
        vmem_limit_bytes=vmem_limit,
    )

    def _run(single_buffer_weights: bool):
        if single_buffer_weights:
            # Constant-index operands are fetched once: one VMEM buffer is
            # enough, halving the resident weight footprint (v7x / v5e win).
            const_kw = dict(pipeline_mode=pl.Buffered(1))
        else:
            const_kw = {}
        in_specs = [
            pl.BlockSpec((TB, H), lambda i: (i, 0)),                  # x1
            pl.BlockSpec((TB, H), lambda i: (i, 0)),                  # x2
            pl.BlockSpec((H, D_pad), lambda i: (0, 0), **const_kw),   # w1
            pl.BlockSpec((1, D_pad), lambda i: (0, 0), **const_kw),   # b1
            pl.BlockSpec((H, D_pad), lambda i: (0, 0), **const_kw),   # w2
            pl.BlockSpec((1, D_pad), lambda i: (0, 0), **const_kw),   # b2
            pl.BlockSpec((1, 1, TB), lambda i: (i, 0, 0)),            # labels
        ]
        out_spec = pl.BlockSpec((1, 1, 1), lambda i: (i, 0, 0))
        return pl.pallas_call(
            kernel,
            out_shape=jax.ShapeDtypeStruct((num_tiles, 1, 1), jnp.float32),
            grid=(num_tiles,),
            in_specs=in_specs,
            out_specs=out_spec,
            compiler_params=compiler_params,
            cost_estimate=cost,
        )(x1, x2, w1, b1, w2, b2, y)

    try:
        partials = _run(True)
    except Exception:
        # pl.Buffered(1) not honored on this jax/libtpu build: fall back to the
        # default double-buffered weights (correct, just more VMEM).
        partials = _run(False)

    # BCEWithLogitsLoss(reduction='sum'); padded/masked rows contributed 0.
    return jnp.sum(partials)


def _reference(x1, x2, w1, b1, w2, b2, labels):
    reps1 = x1 @ w1 + b1.reshape(1, -1)
    reps2 = x2 @ w2 + b2.reshape(1, -1)
    sim = jnp.sum(reps1 * reps2, axis=-1)
    yl = labels.reshape(-1).astype(sim.dtype)
    bce = jnp.maximum(sim, 0.0) - sim * yl + jnp.log1p(jnp.exp(-jnp.abs(sim)))
    return jnp.sum(bce)


if __name__ == "__main__":
    key = jax.random.PRNGKey(0)
    k1, k2, k3, k4, k5, k6, k7, k8, k9 = jax.random.split(key, 9)

    # --- test 1: single tile, f32, D padded 32 -> 128 ------------------------
    B, H, D = 8, 32, 32
    x1 = jax.random.normal(k1, (B, H), dtype=jnp.float32)
    x2 = jax.random.normal(k2, (B, H), dtype=jnp.float32)
    w1 = jax.random.normal(k3, (H, D), dtype=jnp.float32) * 0.05
    b1 = jnp.zeros((1, D), dtype=jnp.float32)
    w2, b2 = w1, b1                       # model2 = deepcopy(model1)
    labels = jax.random.bernoulli(k4, 0.5, (B,)).astype(jnp.float32)

    loss = contrastive_tension_loss(x1, x2, w1, b1, w2, b2, labels)
    jax.block_until_ready(loss)
    ref = _reference(x1, x2, w1, b1, w2, b2, labels)
    assert jnp.allclose(loss, ref, rtol=1e-5, atol=1e-5), (loss, ref)

    # --- test 2: 3-tile grid with a partial (masked) last tile, nonzero bias -
    B2, H2, D2 = 20, 64, 48
    x1b = jax.random.normal(k5, (B2, H2), dtype=jnp.float32)
    x2b = jax.random.normal(k6, (B2, H2), dtype=jnp.float32)
    w1b = jax.random.normal(k7, (H2, D2), dtype=jnp.float32) * 0.05
    b1b = jax.random.normal(k8, (1, D2), dtype=jnp.float32) * 0.1
    labels_b = jax.random.bernoulli(k9, 0.5, (B2,)).astype(jnp.float32)

    ref2 = _reference(x1b, x2b, w1b, b1b, w1b, b1b, labels_b)

    loss2 = contrastive_tension_loss(x1b, x2b, w1b, b1b, w1b, b1b, labels_b,
                                     block_b=8)   # TB=8 -> 3 tiles, last has 4 rows
    jax.block_until_ready(loss2)
    assert jnp.allclose(loss2, ref2, rtol=1e-5, atol=1e-5), (loss2, ref2)

    # --- test 3: default block_b -> 2-tile split (keeps both v7x TCs busy) ---
    loss3 = contrastive_tension_loss(x1b, x2b, w1b, b1b, w1b, b1b, labels_b)
    jax.block_until_ready(loss3)
    assert jnp.allclose(loss3, ref2, rtol=1e-5, atol=1e-5), (loss3, ref2)

    # --- test 4: bf16 MXU streaming path (v5e/v6e/v7x), looser tolerance -----
    loss_bf16 = contrastive_tension_loss(x1, x2, w1, b1, w2, b2, labels,
                                         matmul_dtype=jnp.bfloat16)
    jax.block_until_ready(loss_bf16)
    assert jnp.allclose(loss_bf16, ref, rtol=5e-2, atol=5e-2), (loss_bf16, ref)

    print("KERNEL_OK")
</pallas_src>

<mosaic_0001>
module attributes {stable_mosaic.version = 11 : i64} {
  func.func @ct_loss_kernel(%arg0: i32, %arg1: memref<8x32xf32, #tpu.memory_space<vmem>>, %arg2: memref<8x32xf32, #tpu.memory_space<vmem>>, %arg3: memref<32x128xf32, #tpu.memory_space<vmem>>, %arg4: memref<1x128xf32, #tpu.memory_space<vmem>>, %arg5: memref<32x128xf32, #tpu.memory_space<vmem>>, %arg6: memref<1x128xf32, #tpu.memory_space<vmem>>, %arg7: memref<1x1x8xf32, #tpu.memory_space<vmem>>, %arg8: memref<1x1x1xf32, #tpu.memory_space<vmem>>) attributes {dimension_semantics = [#tpu.dimension_semantics<parallel>], iteration_bounds = array<i64: 1>, scalar_prefetch = 0 : i64, scratch_operands = 0 : i64, tpu.core_type = #tpu.core_type<tc>, window_params = [{transform_indices = @transform_0, window_bounds = array<i64: 8, 32>}, {transform_indices = @transform_1, window_bounds = array<i64: 8, 32>}, {pipeline_mode = #tpu.pipeline_mode<synchronous>, transform_indices = @transform_2, window_bounds = array<i64: 32, 128>}, {pipeline_mode = #tpu.pipeline_mode<synchronous>, transform_indices = @transform_3, window_bounds = array<i64: 1, 128>}, {pipeline_mode = #tpu.pipeline_mode<synchronous>, transform_indices = @transform_4, window_bounds = array<i64: 32, 128>}, {pipeline_mode = #tpu.pipeline_mode<synchronous>, transform_indices = @transform_5, window_bounds = array<i64: 1, 128>}, {transform_indices = @transform_6, window_bounds = array<i64: 1, 1, 8>}, {transform_indices = @transform_7, window_bounds = array<i64: 1, 1, 1>}]} {
    %c0 = arith.constant 0 : index
    %c0_0 = arith.constant 0 : index
    %0 = vector.load %arg1[%c0, %c0_0] : memref<8x32xf32, #tpu.memory_space<vmem>>, vector<8x32xf32>
    %c0_1 = arith.constant 0 : index
    %c0_2 = arith.constant 0 : index
    %1 = vector.load %arg3[%c0_1, %c0_2] : memref<32x128xf32, #tpu.memory_space<vmem>>, vector<32x128xf32>
    %cst = arith.constant dense<0.000000e+00> : vector<8x128xf32>
    %2 = tpu.matmul %0, %1, %cst {dimension_numbers = #tpu.dot_dimension_numbers<[1], [0], [0], [1], [0, 0, 1, 1], [], []>} : vector<8x32xf32>, vector<32x128xf32>, vector<8x128xf32> -> vector<8x128xf32>
    %c0_3 = arith.constant 0 : index
    %c0_4 = arith.constant 0 : index
    %3 = vector.load %arg4[%c0_3, %c0_4] : memref<1x128xf32, #tpu.memory_space<vmem>>, vector<1x128xf32>
    %4 = vector.broadcast %3 : vector<1x128xf32> to vector<8x128xf32>
    %5 = arith.addf %2, %4 : vector<8x128xf32>
    %c0_5 = arith.constant 0 : index
    %c0_6 = arith.constant 0 : index
    %6 = vector.load %arg2[%c0_5, %c0_6] : memref<8x32xf32, #tpu.memory_space<vmem>>, vector<8x32xf32>
    %c0_7 = arith.constant 0 : index
    %c0_8 = arith.constant 0 : index
    %7 = vector.load %arg5[%c0_7, %c0_8] : memref<32x128xf32, #tpu.memory_space<vmem>>, vector<32x128xf32>
    %cst_9 = arith.constant dense<0.000000e+00> : vector<8x128xf32>
    %8 = tpu.matmul %6, %7, %cst_9 {dimension_numbers = #tpu.dot_dimension_numbers<[1], [0], [0], [1], [0, 0, 1, 1], [], []>} : vector<8x32xf32>, vector<32x128xf32>, vector<8x128xf32> -> vector<8x128xf32>
    %c0_10 = arith.constant 0 : index
    %c0_11 = arith.constant 0 : index
    %9 = vector.load %arg6[%c0_10, %c0_11] : memref<1x128xf32, #tpu.memory_space<vmem>>, vector<1x128xf32>
    %10 = vector.broadcast %9 : vector<1x128xf32> to vector<8x128xf32>
    %11 = arith.addf %8, %10 : vector<8x128xf32>
    %12 = arith.mulf %5, %11 : vector<8x128xf32>
    %cst_12 = arith.constant 1.000000e+00 : f32
    %13 = vector.broadcast %cst_12 : f32 to vector<8x128xf32>
    %cst_13 = arith.constant dense<0.000000e+00> : vector<8x8xf32>
    %14 = tpu.matmul %13, %12, %cst_13 {dimension_numbers = #tpu.dot_dimension_numbers<[1], [1], [0], [0], [0, 0, 1, 0], [], []>} : vector<8x128xf32>, vector<8x128xf32>, vector<8x8xf32> -> vector<8x8xf32>
    %15 = vector.extract_strided_slice %14 {offsets = [0, 0], sizes = [1, 8], strides = [1, 1]} : vector<8x8xf32> to vector<1x8xf32>
    %c0_14 = arith.constant 0 : index
    %c0_15 = arith.constant 0 : index
    %c0_16 = arith.constant 0 : index
    %16 = vector.load %arg7[%c0_14, %c0_15, %c0_16] : memref<1x1x8xf32, #tpu.memory_space<vmem>>, vector<1x1x8xf32>
    %17 = vector.shape_cast %16 : vector<1x1x8xf32> to vector<1x8xf32>
    %18 = tpu.iota {dimensions = array<i32: 1>} : vector<1x8xi32>
    %c8_i32 = arith.constant 8 : i32
    %19 = arith.muli %arg0, %c8_i32 : i32
    %20 = vector.broadcast %19 : i32 to vector<1x8xi32>
    %21 = arith.addi %20, %18 : vector<1x8xi32>
    %c8_i32_17 = arith.constant 8 : i32
    %22 = vector.broadcast %c8_i32_17 : i32 to vector<1x8xi32>
    %23 = arith.cmpi slt, %21, %22 : vector<1x8xi32>
    %cst_18 = arith.constant 0.000000e+00 : f32
    %24 = vector.broadcast %cst_18 : f32 to vector<1x8xf32>
    %25 = arith.maximumf %15, %24 : vector<1x8xf32>
    %26 = arith.mulf %15, %17 : vector<1x8xf32>
    %27 = arith.subf %25, %26 : vector<1x8xf32>
    %28 = math.absf %15 : vector<1x8xf32>
    %cst_19 = arith.constant 0.000000e+00 : f32
    %29 = vector.broadcast %cst_19 : f32 to vector<1x8xf32>
    %30 = arith.subf %29, %28 : vector<1x8xf32>
    %31 = math.exp %30 : vector<1x8xf32>
    %32 = math.log1p %31 : vector<1x8xf32>
    %33 = arith.addf %27, %32 : vector<1x8xf32>
    %cst_20 = arith.constant 0.000000e+00 : f32
    %34 = vector.broadcast %cst_20 : f32 to vector<1x8xf32>
    %35 = arith.select %23, %33, %34 : vector<1x8xi1>, vector<1x8xf32>
    %36 = vector.shape_cast %35 : vector<1x8xf32> to vector<1x1x8xf32>
    %cst_21 = arith.constant dense<0.000000e+00> : vector<1xf32>
    %37 = vector.multi_reduction <add>, %36, %cst_21 [1, 2] : vector<1x1x8xf32> to vector<1xf32>
    %38 = vector.shape_cast %37 : vector<1xf32> to vector<1x1x1xf32>
    %39 = vector.extract %38[0, 0, 0] : f32 from vector<1x1x1xf32>
    %40 = vector.broadcast %39 : f32 to vector<1x1x1xf32>
    %c0_22 = arith.constant 0 : index
    %c0_23 = arith.constant 0 : index
    %c0_24 = arith.constant 0 : index
    %41 = vector.load %arg8[%c0_22, %c0_23, %c0_24] : memref<1x1x1xf32, #tpu.memory_space<vmem>>, vector<1x1x1xf32>
    tpu.vector_store %arg8[%c0_22, %c0_23, %c0_24], %40 {strides = array<i32>} : memref<1x1x1xf32, #tpu.memory_space<vmem>>, vector<1x1x1xf32>,
    return
  }
  func.func @transform_0(%arg0: i32) -> (i32, i32) {
    %c0_i32 = arith.constant 0 : i32
    %c0_i32_0 = arith.constant 0 : i32
    return %arg0, %c0_i32 : i32, i32
  }
  func.func @transform_1(%arg0: i32) -> (i32, i32) {
    %c0_i32 = arith.constant 0 : i32
    %c0_i32_0 = arith.constant 0 : i32
    return %arg0, %c0_i32 : i32, i32
  }
  func.func @transform_2(%arg0: i32) -> (i32, i32) {
    %c0_i32 = arith.constant 0 : i32
    %c0_i32_0 = arith.constant 0 : i32
    %c0_i32_1 = arith.constant 0 : i32
    return %c0_i32, %c0_i32_0 : i32, i32
  }
  func.func @transform_3(%arg0: i32) -> (i32, i32) {
    %c0_i32 = arith.constant 0 : i32
    %c0_i32_0 = arith.constant 0 : i32
    %c0_i32_1 = arith.constant 0 : i32
    return %c0_i32, %c0_i32_0 : i32, i32
  }
  func.func @transform_4(%arg0: i32) -> (i32, i32) {
    %c0_i32 = arith.constant 0 : i32
    %c0_i32_0 = arith.constant 0 : i32
    %c0_i32_1 = arith.constant 0 : i32
    return %c0_i32, %c0_i32_0 : i32, i32
  }
  func.func @transform_5(%arg0: i32) -> (i32, i32) {
    %c0_i32 = arith.constant 0 : i32
    %c0_i32_0 = arith.constant 0 : i32
    %c0_i32_1 = arith.constant 0 : i32
    return %c0_i32, %c0_i32_0 : i32, i32
  }
  func.func @transform_6(%arg0: i32) -> (i32, i32, i32) {
    %c0_i32 = arith.constant 0 : i32
    %c0_i32_0 = arith.constant 0 : i32
    %c0_i32_1 = arith.constant 0 : i32
    return %arg0, %c0_i32, %c0_i32_0 : i32, i32, i32
  }
  func.func @transform_7(%arg0: i32) -> (i32, i32, i32) {
    %c0_i32 = arith.constant 0 : i32
    %c0_i32_0 = arith.constant 0 : i32
    %c0_i32_1 = arith.constant 0 : i32
    return %arg0, %c0_i32, %c0_i32_0 : i32, i32, i32
  }
}

module attributes {stable_mosaic.version = 11 : i64} {
  func.func @ct_loss_kernel(%arg0: i32, %arg1: memref<8x32xf32, #tpu.memory_space<vmem>>, %arg2: memref<8x32xf32, #tpu.memory_space<vmem>>, %arg3: memref<32x128xf32, #tpu.memory_space<vmem>>, %arg4: memref<1x128xf32, #tpu.memory_space<vmem>>, %arg5: memref<32x128xf32, #tpu.memory_space<vmem>>, %arg6: memref<1x128xf32, #tpu.memory_space<vmem>>, %arg7: memref<1x1x8xf32, #tpu.memory_space<vmem>>, %arg8: memref<1x1x1xf32, #tpu.memory_space<vmem>>) attributes {dimension_semantics = [#tpu.dimension_semantics<parallel>], iteration_bounds = array<i64: 1>, scalar_prefetch = 0 : i64, scratch_operands = 0 : i64, tpu.core_type = #tpu.core_type<tc>, window_params = [{transform_indices = @transform_0, window_bounds = array<i64: 8, 32>}, {transform_indices = @transform_1, window_bounds = array<i64: 8, 32>}, {pipeline_mode = #tpu.pipeline_mode<synchronous>, transform_indices = @transform_2, window_bounds = array<i64: 32, 128>}, {pipeline_mode = #tpu.pipeline_mode<synchronous>, transform_indices = @transform_3, window_bounds = array<i64: 1, 128>}, {pipeline_mode = #tpu.pipeline_mode<synchronous>, transform_indices = @transform_4, window_bounds = array<i64: 32, 128>}, {pipeline_mode = #tpu.pipeline_mode<synchronous>, transform_indices = @transform_5, window_bounds = array<i64: 1, 128>}, {transform_indices = @transform_6, window_bounds = array<i64: 1, 1, 8>}, {transform_indices = @transform_7, window_bounds = array<i64: 1, 1, 1>}]} {
    %c0 = arith.constant 0 : index
    %c0_0 = arith.constant 0 : index
    %0 = vector.load %arg1[%c0, %c0_0] : memref<8x32xf32, #tpu.memory_space<vmem>>, vector<8x32xf32>
    %c0_1 = arith.constant 0 : index
    %c0_2 = arith.constant 0 : index
    %1 = vector.load %arg3[%c0_1, %c0_2] : memref<32x128xf32, #tpu.memory_space<vmem>>, vector<32x128xf32>
    %cst = arith.constant dense<0.000000e+00> : vector<8x128xf32>
    %2 = tpu.matmul %0, %1, %cst {dimension_numbers = #tpu.dot_dimension_numbers<[1], [0], [0], [1], [0, 0, 1, 1], [], []>} : vector<8x32xf32>, vector<32x128xf32>, vector<8x128xf32> -> vector<8x128xf32>
    %c0_3 = arith.constant 0 : index
    %c0_4 = arith.constant 0 : index
    %3 = vector.load %arg4[%c0_3, %c0_4] : memref<1x128xf32, #tpu.memory_space<vmem>>, vector<1x128xf32>
    %4 = vector.broadcast %3 : vector<1x128xf32> to vector<8x128xf32>
    %5 = arith.addf %2, %4 : vector<8x128xf32>
    %c0_5 = arith.constant 0 : index
    %c0_6 = arith.constant 0 : index
    %6 = vector.load %arg2[%c0_5, %c0_6] : memref<8x32xf32, #tpu.memory_space<vmem>>, vector<8x32xf32>
    %c0_7 = arith.constant 0 : index
    %c0_8 = arith.constant 0 : index
    %7 = vector.load %arg5[%c0_7, %c0_8] : memref<32x128xf32, #tpu.memory_space<vmem>>, vector<32x128xf32>
    %cst_9 = arith.constant dense<0.000000e+00> : vector<8x128xf32>
    %8 = tpu.matmul %6, %7, %cst_9 {dimension_numbers = #tpu.dot_dimension_numbers<[1], [0], [0], [1], [0, 0, 1, 1], [], []>} : vector<8x32xf32>, vector<32x128xf32>, vector<8x128xf32> -> vector<8x128xf32>
    %c0_10 = arith.constant 0 : index
    %c0_11 = arith.constant 0 : index
    %9 = vector.load %arg6[%c0_10, %c0_11] : memref<1x128xf32, #tpu.memory_space<vmem>>, vector<1x128xf32>
    %10 = vector.broadcast %9 : vector<1x128xf32> to vector<8x128xf32>
    %11 = arith.addf %8, %10 : vector<8x128xf32>
    %12 = arith.mulf %5, %11 : vector<8x128xf32>
    %cst_12 = arith.constant 1.000000e+00 : f32
    %13 = vector.broadcast %cst_12 : f32 to vector<8x128xf32>
    %cst_13 = arith.constant dense<0.000000e+00> : vector<8x8xf32>
    %14 = tpu.matmul %13, %12, %cst_13 {dimension_numbers = #tpu.dot_dimension_numbers<[1], [1], [0], [0], [0, 0, 1, 0], [], []>} : vector<8x128xf32>, vector<8x128xf32>, vector<8x8xf32> -> vector<8x8xf32>
    %15 = vector.extract_strided_slice %14 {offsets = [0, 0], sizes = [1, 8], strides = [1, 1]} : vector<8x8xf32> to vector<1x8xf32>
    %c0_14 = arith.constant 0 : index
    %c0_15 = arith.constant 0 : index
    %c0_16 = arith.constant 0 : index
    %16 = vector.load %arg7[%c0_14, %c0_15, %c0_16] : memref<1x1x8xf32, #tpu.memory_space<vmem>>, vector<1x1x8xf32>
    %17 = vector.shape_cast %16 : vector<1x1x8xf32> to vector<1x8xf32>
    %18 = tpu.iota {dimensions = array<i32: 1>} : vector<1x8xi32>
    %c8_i32 = arith.constant 8 : i32
    %19 = arith.muli %arg0, %c8_i32 : i32
    %20 = vector.broadcast %19 : i32 to vector<1x8xi32>
    %21 = arith.addi %20, %18 : vector<1x8xi32>
    %c8_i32_17 = arith.constant 8 : i32
    %22 = vector.broadcast %c8_i32_17 : i32 to vector<1x8xi32>
    %23 = arith.cmpi slt, %21, %22 : vector<1x8xi32>
    %cst_18 = arith.constant 0.000000e+00 : f32
    %24 = vector.broadcast %cst_18 : f32 to vector<1x8xf32>
    %25 = arith.maximumf %15, %24 : vector<1x8xf32>
    %26 = arith.mulf %15, %17 : vector<1x8xf32>
    %27 = arith.subf %25, %26 : vector<1x8xf32>
    %28 = math.absf %15 : vector<1x8xf32>
    %cst_19 = arith.constant 0.000000e+00 : f32
    %29 = vector.broadcast %cst_19 : f32 to vector<1x8xf32>
    %30 = arith.subf %29, %28 : vector<1x8xf32>
    %31 = math.exp %30 : vector<1x8xf32>
    %32 = math.log1p %31 : vector<1x8xf32>
    %33 = arith.addf %27, %32 : vector<1x8xf32>
    %cst_20 = arith.constant 0.000000e+00 : f32
    %34 = vector.broadcast %cst_20 : f32 to vector<1x8xf32>
    %35 = arith.select %23, %33, %34 : vector<1x8xi1>, vector<1x8xf32>
    %36 = vector.shape_cast %35 : vector<1x8xf32> to vector<1x1x8xf32>
    %cst_21 = arith.constant dense<0.000000e+00> : vector<1xf32>
    %37 = vector.multi_reduction <add>, %36, %cst_21 [1, 2] : vector<1x1x8xf32> to vector<1xf32>
    %38 = vector.shape_cast %37 : vector<1xf32> to vector<1x1x1xf32>
    %39 = vector.extract %38[0, 0, 0] : f32 from vector<1x1x1xf32>
    %40 = vector.broadcast %39 : f32 to vector<1x1x1xf32>
    %c0_22 = arith.constant 0 : index
    %c0_23 = arith.constant 0 : index
    %c0_24 = arith.constant 0 : index
    %41 = vector.load %arg8[%c0_22, %c0_23, %c0_24] : memref<1x1x1xf32, #tpu.memory_space<vmem>>, vector<1x1x1xf32>
    tpu.vector_store %arg8[%c0_22, %c0_23, %c0_24], %40 {strides = array<i32>} : memref<1x1x1xf32, #tpu.memory_space<vmem>>, vector<1x1x1xf32>,
    return
  }
  func.func @transform_0(%arg0: i32) -> (i32, i32) {
    %c0_i32 = arith.constant 0 : i32
    %c0_i32_0 = arith.constant 0 : i32
    return %arg0, %c0_i32 : i32, i32
  }
  func.func @transform_1(%arg0: i32) -> (i32, i32) {
    %c0_i32 = arith.constant 0 : i32
    %c0_i32_0 = arith.constant 0 : i32
    return %arg0, %c0_i32 : i32, i32
  }
  func.func @transform_2(%arg0: i32) -> (i32, i32) {
    %c0_i32 = arith.constant 0 : i32
    %c0_i32_0 = arith.constant 0 : i32
    %c0_i32_1 = arith.constant 0 : i32
    return %c0_i32, %c0_i32_0 : i32, i32
  }
  func.func @transform_3(%arg0: i32) -> (i32, i32) {
    %c0_i32 = arith.constant 0 : i32
    %c0_i32_0 = arith.constant 0 : i32
    %c0_i32_1 = arith.constant 0 : i32
    return %c0_i32, %c0_i32_0 : i32, i32
  }
  func.func @transform_4(%arg0: i32) -> (i32, i32) {
    %c0_i32 = arith.constant 0 : i32
    %c0_i32_0 = arith.constant 0 : i32
    %c0_i32_1 = arith.constant 0 : i32
    return %c0_i32, %c0_i32_0 : i32, i32
  }
  func.func @transform_5(%arg0: i32) -> (i32, i32) {
    %c0_i32 = arith.constant 0 : i32
    %c0_i32_0 = arith.constant 0 : i32
    %c0_i32_1 = arith.constant 0 : i32
    return %c0_i32, %c0_i32_0 : i32, i32
  }
  func.func @transform_6(%arg0: i32) -> (i32, i32, i32) {
    %c0_i32 = arith.constant 0 : i32
    %c0_i32_0 = arith.constant 0 : i32
    %c0_i32_1 = arith.constant 0 : i32
    return %arg0, %c0_i32, %c0_i32_0 : i32, i32, i32
  }
  func.func @transform_7(%arg0: i32) -> (i32, i32, i32) {
    %c0_i32 = arith.constant 0 : i32
    %c0_i32_0 = arith.constant 0 : i32
    %c0_i32_1 = arith.constant 0 : i32
    return %arg0, %c0_i32, %c0_i32_0 : i32, i32, i32
  }
}

</mosaic_0001>

<llo_original>
// kernel: tpu_custom_call.1
$region0: #{tpu_custom_call.1}
  #allocation0 [shape = 'u32[]', space=smem, size = 0x4, offset = 0x4, fixed_abs, tag = 'smem constant byte address 0x4 - core index']
  #allocation1 [shape = 'u32[144,128]{1,0:T(1,128)}', space=vmem, size = 0x12000, scoped, tag = 'internal scratch']
  %s0 = inlined_call_operand.hbm [shape: f32[8,32], index: 0, kind: input, shape index: {}]
  %s1 = inlined_call_operand.hbm [shape: f32[8,32], index: 1, kind: input, shape index: {}]
  %s2 = inlined_call_operand.hbm [shape: f32[32,128], index: 2, kind: input, shape index: {}]
  %s3 = inlined_call_operand.vmem [shape: f32[1,128], index: 3, kind: input, shape index: {}]
  %s4 = inlined_call_operand.hbm [shape: f32[32,128], index: 4, kind: input, shape index: {}]
  %s5 = inlined_call_operand.vmem [shape: f32[1,128], index: 5, kind: input, shape index: {}]
  %s6 = inlined_call_operand.vmem [shape: f32[1,1,8], index: 6, kind: input, shape index: {}]
  %s7 = inlined_call_operand.hbm [shape: f32[1,1,1], index: 7, kind: output, shape index: {}]
  %s8 = sld [smem:[#allocation0]]
  $region54: #{tpu_custom_call.1} parent=0
    _
  %s10 = ssub.s32 1, %s8
  %s11 = scalar_select 0, %s10, %s8
  $region1: #{tpu_custom_call.1} parent=0
    #allocation2 [shape = 'u8[4096]{0}', space=vmem, size = 0x1000, scoped, tag = 'input window, operand 0, single buffered']
    #allocation3 [shape = 's32[1]{0}', space=sflag, size = 0x4, scoped, tag = 'scoped memory for tpu_custom_call.1']
    #allocation4 [shape = 's32[1]{0}', space=sflag, size = 0x4, scoped, tag = 'scoped memory for tpu_custom_call.1']
    #allocation5 [shape = 'u8[4096]{0}', space=vmem, size = 0x1000, scoped, tag = 'input window, operand 1, single buffered']
    #allocation6 [shape = 's32[1]{0}', space=sflag, size = 0x4, scoped, tag = 'scoped memory for tpu_custom_call.1']
    #allocation7 [shape = 'u8[16384]{0}', space=vmem, size = 0x4000, scoped, tag = 'input window, operand 2, single buffered']
    #allocation8 [shape = 'u8[16384]{0}', space=vmem, size = 0x4000, scoped, tag = 'input window, operand 4, single buffered']
    #allocation9 [shape = 's32[1]{0}', space=sflag, size = 0x4, scoped, tag = 'scoped memory for tpu_custom_call.1']
    #allocation10 [shape = 'u8[512]{0}', space=vmem, size = 0x400, scoped, tag = 'output window, operand 0, single buffered']
    %12 = vsyncpa [#allocation3], 0
    %13 = vsyncpa [#allocation6], 0
    %14 = vsyncpa [#allocation9], 0
    %15 = vsyncpa [#allocation4], 0
    // Predicated region
    $region2: #{tpu_custom_call.1} parent=1 // pred_check
      _
    $region3: #{tpu_custom_call.1} parent=1 // pred_check_branch
      %17 = sbr.rel (0) target = $region5
    $region4: #{tpu_custom_call.1} parent=1 // pred_region
      %s19 = ssub.s32 128, 128
      %20 = vsyncadd [#allocation3], %s19
      %s22 = sshll.u32 [#allocation2], 4
      %s23 = int_to_ptr.vmem [resolvable:$true] %s22
      %25 = dma.hbm_to_vmem [thread:$0]  %s0, 128, %s23, [#allocation3]
    $region5: #{tpu_custom_call.1} parent=1 // pred_fallthru
      _
    // Predicated region
    $region6: #{tpu_custom_call.1} parent=1 // pred_check
      _
    $region7: #{tpu_custom_call.1} parent=1 // pred_check_branch
      %27 = sbr.rel (0) target = $region9
    $region8: #{tpu_custom_call.1} parent=1 // pred_region
      %s29 = ssub.s32 128, 128
      %30 = vsyncadd [#allocation6], %s29
      %s32 = sshll.u32 [#allocation5], 4
      %s33 = int_to_ptr.vmem [resolvable:$true] %s32
      %35 = dma.hbm_to_vmem [thread:$0]  %s1, 128, %s33, [#allocation6]
    $region9: #{tpu_custom_call.1} parent=1 // pred_fallthru
      _
    // Predicated region
    $region10: #{tpu_custom_call.1} parent=1 // pred_check
      _
    $region11: #{tpu_custom_call.1} parent=1 // pred_check_branch
      %37 = sbr.rel (0) target = $region13
    $region12: #{tpu_custom_call.1} parent=1 // pred_region
      %s39 = ssub.s32 512, 512
      %40 = vsyncadd [#allocation6], %s39
      %s41 = sshll.u32 [#allocation7], 4
      %s42 = int_to_ptr.vmem [resolvable:$true] %s41
      %47 = dma.hbm_to_vmem [thread:$0]  %s2, 512, %s42, [#allocation6], 128, 128, 8
    $region13: #{tpu_custom_call.1} parent=1 // pred_fallthru
      _
    // Predicated region
    $region14: #{tpu_custom_call.1} parent=1 // pred_check
      _
    $region15: #{tpu_custom_call.1} parent=1 // pred_check_branch
      %49 = sbr.rel (0) target = $region17
    $region16: #{tpu_custom_call.1} parent=1 // pred_region
      _
    $region17: #{tpu_custom_call.1} parent=1 // pred_fallthru
      _
    // Predicated region
    $region18: #{tpu_custom_call.1} parent=1 // pred_check
      _
    $region19: #{tpu_custom_call.1} parent=1 // pred_check_branch
      %51 = sbr.rel (0) target = $region21
    $region20: #{tpu_custom_call.1} parent=1 // pred_region
      %s53 = ssub.s32 512, 512
      %54 = vsyncadd [#allocation9], %s53
      %s55 = sshll.u32 [#allocation8], 4
      %s56 = int_to_ptr.vmem [resolvable:$true] %s55
      %61 = dma.hbm_to_vmem [thread:$0]  %s4, 512, %s56, [#allocation9], 128, 128, 8
    $region21: #{tpu_custom_call.1} parent=1 // pred_fallthru
      _
    // Predicated region
    $region22: #{tpu_custom_call.1} parent=1 // pred_check
      _
    $region23: #{tpu_custom_call.1} parent=1 // pred_check_branch
      %63 = sbr.rel (0) target = $region25
    $region24: #{tpu_custom_call.1} parent=1 // pred_region
      _
    $region25: #{tpu_custom_call.1} parent=1 // pred_fallthru
      _
    // Predicated region
    $region26: #{tpu_custom_call.1} parent=1 // pred_check
      _
    $region27: #{tpu_custom_call.1} parent=1 // pred_check_branch
      %65 = sbr.rel (0) target = $region29
    $region28: #{tpu_custom_call.1} parent=1 // pred_region
      _
    $region29: #{tpu_custom_call.1} parent=1 // pred_fallthru
      _
    // Predicated region
    $region30: #{tpu_custom_call.1} parent=1 // pred_check
      _
    $region31: #{tpu_custom_call.1} parent=1 // pred_check_branch
      %67 = sbr.rel (0) target = $region33
    $region32: #{tpu_custom_call.1} parent=1 // pred_region
      %68 = dma.done [#allocation3], 128
    $region33: #{tpu_custom_call.1} parent=1 // pred_fallthru
      _
    // Predicated region
    $region34: #{tpu_custom_call.1} parent=1 // pred_check
      _
    $region35: #{tpu_custom_call.1} parent=1 // pred_check_branch
      %70 = sbr.rel (0) target = $region37
    $region36: #{tpu_custom_call.1} parent=1 // pred_region
      %71 = dma.done [#allocation6], 128
    $region37: #{tpu_custom_call.1} parent=1 // pred_fallthru
      _
    // Predicated region
    $region38: #{tpu_custom_call.1} parent=1 // pred_check
      _
    $region39: #{tpu_custom_call.1} parent=1 // pred_check_branch
      %73 = sbr.rel (0) target = $region41
    $region40: #{tpu_custom_call.1} parent=1 // pred_region
      %74 = dma.done [#allocation6], 512
    $region41: #{tpu_custom_call.1} parent=1 // pred_fallthru
      _
    // Predicated region
    $region42: #{tpu_custom_call.1} parent=1 // pred_check
      _
    $region43: #{tpu_custom_call.1} parent=1 // pred_check_branch
      %76 = sbr.rel (0) target = $region45
    $region44: #{tpu_custom_call.1} parent=1 // pred_region
      %77 = dma.done [#allocation9], 512
    $region45: #{tpu_custom_call.1} parent=1 // pred_fallthru
      _
    %v78 = vld [vmem:[#allocation2] sm:$0xff]
    %v79 = vld [vmem:[#allocation7] sm:$0xff]
    %v80 = vld [vmem:[#allocation7 + $0x8] sm:$0xff]
    %v81 = vld [vmem:[#allocation7 + $0x10] sm:$0xff]
    %v82 = vld [vmem:[#allocation7 + $0x18] sm:$0xff]
    %v83 = vld [vmem:[%s3] sm:$0x1]
    %v85 = vlaneseq
    %v86 = vshrl.u32 %v85, 7
    %v87 = vsub.s32 0, %v86
    %v88 = vrot.slane %v83, %v87
    %vm90 = vcmask 261120
    %v92 = vsel %vm90, %v78, 0
    %94 = vmatprep.subr.mxu0 0.0
    %95 = vmatpush1.msra.mxu0 0.0
    %96 = vmatprep.subr.mxu0 0.0
    %97 = vmatpush1.msra.mxu0 0.0
    %98 = vmatprep.subr.mxu0 0.0
    %99 = vmatpush1.msra.mxu0 0.0
    %100 = vmatprep.subr.mxu0 0.0
    %101 = vmatpush1.msra.mxu0 0.0
    %102 = vmatprep.subr.mxu0 0.0
    %103 = vmatpush1.msra.mxu0 0.0
    %104 = vmatprep.subr.mxu0 0.0
    %105 = vmatpush1.msra.mxu0 0.0
    %106 = vmatprep.subr.mxu0 0.0
    %107 = vmatpush1.msra.mxu0 0.0
    %108 = vmatprep.subr.mxu0 0.0
    %109 = vmatpush1.msra.mxu0 0.0
    %110 = vmatprep.subr.mxu0 0.0
    %111 = vmatpush1.msra.mxu0 0.0
    %112 = vmatprep.subr.mxu0 0.0
    %113 = vmatpush1.msra.mxu0 0.0
    %114 = vmatprep.subr.mxu0 0.0
    %115 = vmatpush1.msra.mxu0 0.0
    %116 = vmatprep.subr.mxu0 0.0
    %117 = vmatpush1.msra.mxu0 0.0
    %118 = vmatprep.subr.mxu0 0.0
    %119 = vmatpush1.msra.mxu0 %v82
    %120 = vmatprep.subr.mxu0 0.0
    %121 = vmatpush1.msra.mxu0 %v81
    %122 = vmatprep.subr.mxu0 0.0
    %123 = vmatpush1.msra.mxu0 %v80
    %124 = vmatprep.subr.mxu0 0.0
    %125 = vmatpush1.msra.mxu0 %v79
    %126 = vmatprep.subr.mxu0 0.0
    %127 = vmatpush2.msra.mxu0 0.0
    %128 = vmatprep.subr.mxu0 0.0
    %129 = vmatpush2.msra.mxu0 0.0
    %130 = vmatprep.subr.mxu0 0.0
    %131 = vmatpush2.msra.mxu0 0.0
    %132 = vmatprep.subr.mxu0 0.0
    %133 = vmatpush2.msra.mxu0 0.0
    %134 = vmatprep.subr.mxu0 0.0
    %135 = vmatpush2.msra.mxu0 0.0
    %136 = vmatprep.subr.mxu0 0.0
    %137 = vmatpush2.msra.mxu0 0.0
    %138 = vmatprep.subr.mxu0 0.0
    %139 = vmatpush2.msra.mxu0 0.0
    %140 = vmatprep.subr.mxu0 0.0
    %141 = vmatpush2.msra.mxu0 0.0
    %142 = vmatprep.subr.mxu0 0.0
    %143 = vmatpush2.msra.mxu0 0.0
    %144 = vmatprep.subr.mxu0 0.0
    %145 = vmatpush2.msra.mxu0 0.0
    %146 = vmatprep.subr.mxu0 0.0
    %147 = vmatpush2.msra.mxu0 0.0
    %148 = vmatprep.subr.mxu0 0.0
    %149 = vmatpush2.msra.mxu0 0.0
    %150 = vmatprep.subr.mxu0 0.0
    %151 = vmatpush2.msra.mxu0 0.0
    %152 = vmatprep.subr.mxu0 0.0
    %153 = vmatpush2.msra.mxu0 0.0
    %154 = vmatprep.subr.mxu0 0.0
    %155 = vmatpush2.msra.mxu0 0.0
    %156 = vmatprep.subr.mxu0 0.0
    %157 = vmatpush2.msra.mxu0 0.0
    %158 = vmatprep.mubr.f32.mxu0 0.0
    %159 = vmatmul.mubr.f32.gmra.mxu0 %v92
    %v160 = vpop.f32.mrf.mxu0
    %v161 = vadd.f32 %v88, %v160
    %v162 = vpop.f32.mrf.mxu0
    %163 = vdwg.mxu0
    %v164 = vld [vmem:[#allocation5] sm:$0xff]
    %v165 = vld [vmem:[#allocation8] sm:$0xff]
    %v166 = vld [vmem:[#allocation8 + $0x8] sm:$0xff]
    %v167 = vld [vmem:[#allocation8 + $0x10] sm:$0xff]
    %v168 = vld [vmem:[#allocation8 + $0x18] sm:$0xff]
    %v169 = vld [vmem:[%s5] sm:$0x1]
    %v171 = vlaneseq
    %v172 = vshrl.u32 %v171, 7
    %v173 = vsub.s32 0, %v172
    %v174 = vrot.slane %v169, %v173
    %v177 = vsel %vm90, %v164, 0
    %179 = vmatprep.subr.mxu0 0.0
    %180 = vmatpush1.msra.mxu0 0.0
    %181 = vmatprep.subr.mxu0 0.0
    %182 = vmatpush1.msra.mxu0 0.0
    %183 = vmatprep.subr.mxu0 0.0
    %184 = vmatpush1.msra.mxu0 0.0
    %185 = vmatprep.subr.mxu0 0.0
    %186 = vmatpush1.msra.mxu0 0.0
    %187 = vmatprep.subr.mxu0 0.0
    %188 = vmatpush1.msra.mxu0 0.0
    %189 = vmatprep.subr.mxu0 0.0
    %190 = vmatpush1.msra.mxu0 0.0
    %191 = vmatprep.subr.mxu0 0.0
    %192 = vmatpush1.msra.mxu0 0.0
    %193 = vmatprep.subr.mxu0 0.0
    %194 = vmatpush1.msra.mxu0 0.0
    %195 = vmatprep.subr.mxu0 0.0
    %196 = vmatpush1.msra.mxu0 0.0
    %197 = vmatprep.subr.mxu0 0.0
    %198 = vmatpush1.msra.mxu0 0.0
    %199 = vmatprep.subr.mxu0 0.0
    %200 = vmatpush1.msra.mxu0 0.0
    %201 = vmatprep.subr.mxu0 0.0
    %202 = vmatpush1.msra.mxu0 0.0
    %203 = vmatprep.subr.mxu0 0.0
    %204 = vmatpush1.msra.mxu0 %v168
    %205 = vmatprep.subr.mxu0 0.0
    %206 = vmatpush1.msra.mxu0 %v167
    %207 = vmatprep.subr.mxu0 0.0
    %208 = vmatpush1.msra.mxu0 %v166
    %209 = vmatprep.subr.mxu0 0.0
    %210 = vmatpush1.msra.mxu0 %v165
    %211 = vmatprep.subr.mxu0 0.0
    %212 = vmatpush2.msra.mxu0 0.0
    %213 = vmatprep.subr.mxu0 0.0
    %214 = vmatpush2.msra.mxu0 0.0
    %215 = vmatprep.subr.mxu0 0.0
    %216 = vmatpush2.msra.mxu0 0.0
    %217 = vmatprep.subr.mxu0 0.0
    %218 = vmatpush2.msra.mxu0 0.0
    %219 = vmatprep.subr.mxu0 0.0
    %220 = vmatpush2.msra.mxu0 0.0
    %221 = vmatprep.subr.mxu0 0.0
    %222 = vmatpush2.msra.mxu0 0.0
    %223 = vmatprep.subr.mxu0 0.0
    %224 = vmatpush2.msra.mxu0 0.0
    %225 = vmatprep.subr.mxu0 0.0
    %226 = vmatpush2.msra.mxu0 0.0
    %227 = vmatprep.subr.mxu0 0.0
    %228 = vmatpush2.msra.mxu0 0.0
    %229 = vmatprep.subr.mxu0 0.0
    %230 = vmatpush2.msra.mxu0 0.0
    %231 = vmatprep.subr.mxu0 0.0
    %232 = vmatpush2.msra.mxu0 0.0
    %233 = vmatprep.subr.mxu0 0.0
    %234 = vmatpush2.msra.mxu0 0.0
    %235 = vmatprep.subr.mxu0 0.0
    %236 = vmatpush2.msra.mxu0 0.0
    %237 = vmatprep.subr.mxu0 0.0
    %238 = vmatpush2.msra.mxu0 0.0
    %239 = vmatprep.subr.mxu0 0.0
    %240 = vmatpush2.msra.mxu0 0.0
    %241 = vmatprep.subr.mxu0 0.0
    %242 = vmatpush2.msra.mxu0 0.0
    %243 = vmatprep.mubr.f32.mxu0 0.0
    %244 = vmatmul.mubr.f32.gmra.mxu0 %v177
    %v245 = vpop.f32.mrf.mxu0
    %v246 = vadd.f32 %v174, %v245
    %v247 = vpop.f32.mrf.mxu0
    %248 = vdwg.mxu0
    %v249 = vmul.f32 %v161, %v246
    %250 = vmatprep.subr.mxu0 0.0
    %251 = vmatpush1.xpose.msra.mxu0 0.0
    %252 = vmatprep.subr.mxu0 0.0
    %253 = vmatpush1.xpose.msra.mxu0 0.0
    %254 = vmatprep.subr.mxu0 0.0
    %255 = vmatpush1.xpose.msra.mxu0 0.0
    %256 = vmatprep.subr.mxu0 0.0
    %257 = vmatpush1.xpose.msra.mxu0 0.0
    %258 = vmatprep.subr.mxu0 0.0
    %259 = vmatpush1.xpose.msra.mxu0 0.0
    %260 = vmatprep.subr.mxu0 0.0
    %261 = vmatpush1.xpose.msra.mxu0 0.0
    %262 = vmatprep.subr.mxu0 0.0
    %263 = vmatpush1.xpose.msra.mxu0 0.0
    %264 = vmatprep.subr.mxu0 0.0
    %265 = vmatpush1.xpose.msra.mxu0 0.0
    %266 = vmatprep.subr.mxu0 0.0
    %267 = vmatpush1.xpose.msra.mxu0 0.0
    %268 = vmatprep.subr.mxu0 0.0
    %269 = vmatpush1.xpose.msra.mxu0 0.0
    %270 = vmatprep.subr.mxu0 0.0
    %271 = vmatpush1.xpose.msra.mxu0 0.0
    %272 = vmatprep.subr.mxu0 0.0
    %273 = vmatpush1.xpose.msra.mxu0 0.0
    %274 = vmatprep.subr.mxu0 0.0
    %275 = vmatpush1.xpose.msra.mxu0 0.0
    %276 = vmatprep.subr.mxu0 0.0
    %277 = vmatpush1.xpose.msra.mxu0 0.0
    %278 = vmatprep.subr.mxu0 0.0
    %279 = vmatpush1.xpose.msra.mxu0 0.0
    %280 = vmatprep.subr.mxu0 0.0
    %281 = vmatpush1.xpose.msra.mxu0 %v249
    %282 = vmatprep.subr.mxu0 0.0
    %283 = vmatpush2.xpose.msra.mxu0 0.0
    %284 = vmatprep.subr.mxu0 0.0
    %285 = vmatpush2.xpose.msra.mxu0 0.0
    %286 = vmatprep.subr.mxu0 0.0
    %287 = vmatpush2.xpose.msra.mxu0 0.0
    %288 = vmatprep.subr.mxu0 0.0
    %289 = vmatpush2.xpose.msra.mxu0 0.0
    %290 = vmatprep.subr.mxu0 0.0
    %291 = vmatpush2.xpose.msra.mxu0 0.0
    %292 = vmatprep.subr.mxu0 0.0
    %293 = vmatpush2.xpose.msra.mxu0 0.0
    %294 = vmatprep.subr.mxu0 0.0
    %295 = vmatpush2.xpose.msra.mxu0 0.0
    %296 = vmatprep.subr.mxu0 0.0
    %297 = vmatpush2.xpose.msra.mxu0 0.0
    %298 = vmatprep.subr.mxu0 0.0
    %299 = vmatpush2.xpose.msra.mxu0 0.0
    %300 = vmatprep.subr.mxu0 0.0
    %301 = vmatpush2.xpose.msra.mxu0 0.0
    %302 = vmatprep.subr.mxu0 0.0
    %303 = vmatpush2.xpose.msra.mxu0 0.0
    %304 = vmatprep.subr.mxu0 0.0
    %305 = vmatpush2.xpose.msra.mxu0 0.0
    %306 = vmatprep.subr.mxu0 0.0
    %307 = vmatpush2.xpose.msra.mxu0 0.0
    %308 = vmatprep.subr.mxu0 0.0
    %309 = vmatpush2.xpose.msra.mxu0 0.0
    %310 = vmatprep.subr.mxu0 0.0
    %311 = vmatpush2.xpose.msra.mxu0 0.0
    %312 = vmatprep.subr.mxu0 0.0
    %313 = vmatpush2.xpose.msra.mxu0 0.0
    %314 = vmatprep.mubr.f32.mxu0 0.0
    %315 = vmatmul.mubr.f32.gmra.mxu0 1.0
    %v316 = vpop.f32.mrf.mxu0
    %v317 = vadd.f32 0.0, %v316
    %v318 = vpop.f32.mrf.mxu0
    %319 = vdwg.mxu0
    %v320 = vld [vmem:[%s6] sm:$0x1]
    %v321 = vlaneseq
    %v322 = vand.u32 %v321, 127
    %s323 = smul.u32 0, 8
    %v324 = vstv %s323
    %v325 = vadd.s32 %v324, %v322
    %vm326 = vcmp.lt.s32.totalorder %v325, 8
    %v327 = vmax.f32 %v317, 0.0
    %v328 = vmul.f32 %v317, %v320
    %v329 = vsub.f32 %v327, %v328
    %v330 = vand.u32 2147483647, %v317
    %v331 = vsub.f32 0.0, %v330
    %v332 = vmul.f32 %v331, 1.442695
    %v333 = vpow.pop %v332
    %v334 = vadd.f32 %v333, 1.0
    %v335 = vlog2.pop %v334
    %v336 = vmul.f32 %v335, 0.6931472
    %v337 = vmul.f32 -0.5, %v333
    %v338 = vadd.f32 %v337, 1.0
    %v339 = vmul.f32 %v338, %v333
    %v340 = vand.u32 2147483647, %v333
    %vm341 = vcmp.lt.f32.partialorder %v340, 0.0004427343
    %v342 = vsel %vm341, %v339, %v336
    %v343 = vadd.f32 %v329, %v342
    %v344 = vsel %vm326, %v343, 0.0
    %vm345 = vcmask 57344
    %v346 = vsel %vm345, %v344, 0.0
    %347 = vadd.xlane.f32.xlu0 %v346
    %v348 = vpop.xlane.xlu0 %347
    %v349 = vrot.slane %v348, 4
    %v350 = vadd.f32 %v348, %v349
    %v351 = vrot.slane %v350, 2
    %v352 = vadd.f32 %v350, %v351
    %v353 = vrot.slane %v352, 1
    %v354 = vadd.f32 %v352, %v353
    %s355 = vtos %v354
    %v356 = vstv %s355
    %vm357 = vcmask 0
    %358 = vst.msk [vmem:[#allocation10] sm:$0x1] %vm357, %v356
    // Predicated region
    $region46: #{tpu_custom_call.1} parent=1 // pred_check
      _
    $region47: #{tpu_custom_call.1} parent=1 // pred_check_branch
      %360 = sbr.rel (0) target = $region49
    $region48: #{tpu_custom_call.1} parent=1 // pred_region
      %s362 = ssub.s32 16, 16
      %363 = vsyncadd [#allocation4], %s362
      %s365 = sshll.u32 [#allocation10], 4
      %s366 = int_to_ptr.vmem [resolvable:$true] %s365
      %368 = dma.vmem_to_hbm [thread:$0]  %s366, 16, %s7, [#allocation4]
    $region49: #{tpu_custom_call.1} parent=1 // pred_fallthru
      _
    // Predicated region
    $region50: #{tpu_custom_call.1} parent=1 // pred_check
      _
    $region51: #{tpu_custom_call.1} parent=1 // pred_check_branch
      %370 = sbr.rel (0) target = $region53
    $region52: #{tpu_custom_call.1} parent=1 // pred_region
      %371 = dma.done [#allocation4], 16
    $region53: #{tpu_custom_call.1} parent=1 // pred_fallthru
      _
    %372 = vsyncpa [#allocation3], 1
    %373 = vsyncpa [#allocation6], 1
    %374 = vsyncpa [#allocation9], 1
    %375 = vsyncpa [#allocation4], 1

// kernel: tpu_custom_call.1
$region0: #{tpu_custom_call.1}
  #allocation0 [shape = 'u32[]', space=smem, size = 0x4, offset = 0x4, fixed_abs, tag = 'smem constant byte address 0x4 - core index']
  #allocation1 [shape = 'u32[144,128]{1,0:T(1,128)}', space=vmem, size = 0x12000, scoped, tag = 'internal scratch']
  %s0 = inlined_call_operand.hbm [shape: f32[8,32], index: 0, kind: input, shape index: {}]
  %s1 = inlined_call_operand.hbm [shape: f32[8,32], index: 1, kind: input, shape index: {}]
  %s2 = inlined_call_operand.hbm [shape: f32[32,128], index: 2, kind: input, shape index: {}]
  %s3 = inlined_call_operand.vmem [shape: f32[1,128], index: 3, kind: input, shape index: {}]
  %s4 = inlined_call_operand.hbm [shape: f32[32,128], index: 4, kind: input, shape index: {}]
  %s5 = inlined_call_operand.vmem [shape: f32[1,128], index: 5, kind: input, shape index: {}]
  %s6 = inlined_call_operand.vmem [shape: f32[1,1,8], index: 6, kind: input, shape index: {}]
  %s7 = inlined_call_operand.hbm [shape: f32[1,1,1], index: 7, kind: output, shape index: {}]
  %s8 = sld [smem:[#allocation0]]
  $region54: #{tpu_custom_call.1} parent=0
    _
  %s10 = ssub.s32 1, %s8
  %s11 = scalar_select 0, %s10, %s8
  $region1: #{tpu_custom_call.1} parent=0
    #allocation2 [shape = 'u8[4096]{0}', space=vmem, size = 0x1000, scoped, tag = 'input window, operand 0, single buffered']
    #allocation3 [shape = 's32[1]{0}', space=sflag, size = 0x4, scoped, tag = 'scoped memory for tpu_custom_call.1']
    #allocation4 [shape = 's32[1]{0}', space=sflag, size = 0x4, scoped, tag = 'scoped memory for tpu_custom_call.1']
    #allocation5 [shape = 'u8[4096]{0}', space=vmem, size = 0x1000, scoped, tag = 'input window, operand 1, single buffered']
    #allocation6 [shape = 's32[1]{0}', space=sflag, size = 0x4, scoped, tag = 'scoped memory for tpu_custom_call.1']
    #allocation7 [shape = 'u8[16384]{0}', space=vmem, size = 0x4000, scoped, tag = 'input window, operand 2, single buffered']
    #allocation8 [shape = 'u8[16384]{0}', space=vmem, size = 0x4000, scoped, tag = 'input window, operand 4, single buffered']
    #allocation9 [shape = 's32[1]{0}', space=sflag, size = 0x4, scoped, tag = 'scoped memory for tpu_custom_call.1']
    #allocation10 [shape = 'u8[512]{0}', space=vmem, size = 0x400, scoped, tag = 'output window, operand 0, single buffered']
    %12 = vsyncpa [#allocation3], 0
    %13 = vsyncpa [#allocation6], 0
    %14 = vsyncpa [#allocation9], 0
    %15 = vsyncpa [#allocation4], 0
    // Predicated region
    $region2: #{tpu_custom_call.1} parent=1 // pred_check
      _
    $region3: #{tpu_custom_call.1} parent=1 // pred_check_branch
      %17 = sbr.rel (0) target = $region5
    $region4: #{tpu_custom_call.1} parent=1 // pred_region
      %s19 = ssub.s32 128, 128
      %20 = vsyncadd [#allocation3], %s19
      %s22 = sshll.u32 [#allocation2], 4
      %s23 = int_to_ptr.vmem [resolvable:$true] %s22
      %25 = dma.hbm_to_vmem [thread:$0]  %s0, 128, %s23, [#allocation3]
    $region5: #{tpu_custom_call.1} parent=1 // pred_fallthru
      _
    // Predicated region
    $region6: #{tpu_custom_call.1} parent=1 // pred_check
      _
    $region7: #{tpu_custom_call.1} parent=1 // pred_check_branch
      %27 = sbr.rel (0) target = $region9
    $region8: #{tpu_custom_call.1} parent=1 // pred_region
      %s29 = ssub.s32 128, 128
      %30 = vsyncadd [#allocation6], %s29
      %s32 = sshll.u32 [#allocation5], 4
      %s33 = int_to_ptr.vmem [resolvable:$true] %s32
      %35 = dma.hbm_to_vmem [thread:$0]  %s1, 128, %s33, [#allocation6]
    $region9: #{tpu_custom_call.1} parent=1 // pred_fallthru
      _
    // Predicated region
    $region10: #{tpu_custom_call.1} parent=1 // pred_check
      _
    $region11: #{tpu_custom_call.1} parent=1 // pred_check_branch
      %37 = sbr.rel (0) target = $region13
    $region12: #{tpu_custom_call.1} parent=1 // pred_region
      %s39 = ssub.s32 512, 512
      %40 = vsyncadd [#allocation6], %s39
      %s41 = sshll.u32 [#allocation7], 4
      %s42 = int_to_ptr.vmem [resolvable:$true] %s41
      %47 = dma.hbm_to_vmem [thread:$0]  %s2, 512, %s42, [#allocation6], 128, 128, 8
    $region13: #{tpu_custom_call.1} parent=1 // pred_fallthru
      _
    // Predicated region
    $region14: #{tpu_custom_call.1} parent=1 // pred_check
      _
    $region15: #{tpu_custom_call.1} parent=1 // pred_check_branch
      %49 = sbr.rel (0) target = $region17
    $region16: #{tpu_custom_call.1} parent=1 // pred_region
      _
    $region17: #{tpu_custom_call.1} parent=1 // pred_fallthru
      _
    // Predicated region
    $region18: #{tpu_custom_call.1} parent=1 // pred_check
      _
    $region19: #{tpu_custom_call.1} parent=1 // pred_check_branch
      %51 = sbr.rel (0) target = $region21
    $region20: #{tpu_custom_call.1} parent=1 // pred_region
      %s53 = ssub.s32 512, 512
      %54 = vsyncadd [#allocation9], %s53
      %s55 = sshll.u32 [#allocation8], 4
      %s56 = int_to_ptr.vmem [resolvable:$true] %s55
      %61 = dma.hbm_to_vmem [thread:$0]  %s4, 512, %s56, [#allocation9], 128, 128, 8
    $region21: #{tpu_custom_call.1} parent=1 // pred_fallthru
      _
    // Predicated region
    $region22: #{tpu_custom_call.1} parent=1 // pred_check
      _
    $region23: #{tpu_custom_call.1} parent=1 // pred_check_branch
      %63 = sbr.rel (0) target = $region25
    $region24: #{tpu_custom_call.1} parent=1 // pred_region
      _
    $region25: #{tpu_custom_call.1} parent=1 // pred_fallthru
      _
    // Predicated region
    $region26: #{tpu_custom_call.1} parent=1 // pred_check
      _
    $region27: #{tpu_custom_call.1} parent=1 // pred_check_branch
      %65 = sbr.rel (0) target = $region29
    $region28: #{tpu_custom_call.1} parent=1 // pred_region
      _
    $region29: #{tpu_custom_call.1} parent=1 // pred_fallthru
      _
    // Predicated region
    $region30: #{tpu_custom_call.1} parent=1 // pred_check
      _
    $region31: #{tpu_custom_call.1} parent=1 // pred_check_branch
      %67 = sbr.rel (0) target = $region33
    $region32: #{tpu_custom_call.1} parent=1 // pred_region
      %68 = dma.done [#allocation3], 128
    $region33: #{tpu_custom_call.1} parent=1 // pred_fallthru
      _
    // Predicated region
    $region34: #{tpu_custom_call.1} parent=1 // pred_check
      _
    $region35: #{tpu_custom_call.1} parent=1 // pred_check_branch
      %70 = sbr.rel (0) target = $region37
    $region36: #{tpu_custom_call.1} parent=1 // pred_region
      %71 = dma.done [#allocation6], 128
    $region37: #{tpu_custom_call.1} parent=1 // pred_fallthru
      _
    // Predicated region
    $region38: #{tpu_custom_call.1} parent=1 // pred_check
      _
    $region39: #{tpu_custom_call.1} parent=1 // pred_check_branch
      %73 = sbr.rel (0) target = $region41
    $region40: #{tpu_custom_call.1} parent=1 // pred_region
      %74 = dma.done [#allocation6], 512
    $region41: #{tpu_custom_call.1} parent=1 // pred_fallthru
      _
    // Predicated region
    $region42: #{tpu_custom_call.1} parent=1 // pred_check
      _
    $region43: #{tpu_custom_call.1} parent=1 // pred_check_branch
      %76 = sbr.rel (0) target = $region45
    $region44: #{tpu_custom_call.1} parent=1 // pred_region
      %77 = dma.done [#allocation9], 512
    $region45: #{tpu_custom_call.1} parent=1 // pred_fallthru
      _
    %v78 = vld [vmem:[#allocation2] sm:$0xff]
    %v79 = vld [vmem:[#allocation7] sm:$0xff]
    %v80 = vld [vmem:[#allocation7 + $0x8] sm:$0xff]
    %v81 = vld [vmem:[#allocation7 + $0x10] sm:$0xff]
    %v82 = vld [vmem:[#allocation7 + $0x18] sm:$0xff]
    %v83 = vld [vmem:[%s3] sm:$0x1]
    %v85 = vlaneseq
    %v86 = vshrl.u32 %v85, 7
    %v87 = vsub.s32 0, %v86
    %v88 = vrot.slane %v83, %v87
    %vm90 = vcmask 261120
    %v92 = vsel %vm90, %v78, 0
    %94 = vmatprep.subr.mxu0 0.0
    %95 = vmatpush1.msra.mxu0 0.0
    %96 = vmatprep.subr.mxu0 0.0
    %97 = vmatpush1.msra.mxu0 0.0
    %98 = vmatprep.subr.mxu0 0.0
    %99 = vmatpush1.msra.mxu0 0.0
    %100 = vmatprep.subr.mxu0 0.0
    %101 = vmatpush1.msra.mxu0 0.0
    %102 = vmatprep.subr.mxu0 0.0
    %103 = vmatpush1.msra.mxu0 0.0
    %104 = vmatprep.subr.mxu0 0.0
    %105 = vmatpush1.msra.mxu0 0.0
    %106 = vmatprep.subr.mxu0 0.0
    %107 = vmatpush1.msra.mxu0 0.0
    %108 = vmatprep.subr.mxu0 0.0
    %109 = vmatpush1.msra.mxu0 0.0
    %110 = vmatprep.subr.mxu0 0.0
    %111 = vmatpush1.msra.mxu0 0.0
    %112 = vmatprep.subr.mxu0 0.0
    %113 = vmatpush1.msra.mxu0 0.0
    %114 = vmatprep.subr.mxu0 0.0
    %115 = vmatpush1.msra.mxu0 0.0
    %116 = vmatprep.subr.mxu0 0.0
    %117 = vmatpush1.msra.mxu0 0.0
    %118 = vmatprep.subr.mxu0 0.0
    %119 = vmatpush1.msra.mxu0 %v82
    %120 = vmatprep.subr.mxu0 0.0
    %121 = vmatpush1.msra.mxu0 %v81
    %122 = vmatprep.subr.mxu0 0.0
    %123 = vmatpush1.msra.mxu0 %v80
    %124 = vmatprep.subr.mxu0 0.0
    %125 = vmatpush1.msra.mxu0 %v79
    %126 = vmatprep.subr.mxu0 0.0
    %127 = vmatpush2.msra.mxu0 0.0
    %128 = vmatprep.subr.mxu0 0.0
    %129 = vmatpush2.msra.mxu0 0.0
    %130 = vmatprep.subr.mxu0 0.0
    %131 = vmatpush2.msra.mxu0 0.0
    %132 = vmatprep.subr.mxu0 0.0
    %133 = vmatpush2.msra.mxu0 0.0
    %134 = vmatprep.subr.mxu0 0.0
    %135 = vmatpush2.msra.mxu0 0.0
    %136 = vmatprep.subr.mxu0 0.0
    %137 = vmatpush2.msra.mxu0 0.0
    %138 = vmatprep.subr.mxu0 0.0
    %139 = vmatpush2.msra.mxu0 0.0
    %140 = vmatprep.subr.mxu0 0.0
    %141 = vmatpush2.msra.mxu0 0.0
    %142 = vmatprep.subr.mxu0 0.0
    %143 = vmatpush2.msra.mxu0 0.0
    %144 = vmatprep.subr.mxu0 0.0
    %145 = vmatpush2.msra.mxu0 0.0
    %146 = vmatprep.subr.mxu0 0.0
    %147 = vmatpush2.msra.mxu0 0.0
    %148 = vmatprep.subr.mxu0 0.0
    %149 = vmatpush2.msra.mxu0 0.0
    %150 = vmatprep.subr.mxu0 0.0
    %151 = vmatpush2.msra.mxu0 0.0
    %152 = vmatprep.subr.mxu0 0.0
    %153 = vmatpush2.msra.mxu0 0.0
    %154 = vmatprep.subr.mxu0 0.0
    %155 = vmatpush2.msra.mxu0 0.0
    %156 = vmatprep.subr.mxu0 0.0
    %157 = vmatpush2.msra.mxu0 0.0
    %158 = vmatprep.mubr.f32.mxu0 0.0
    %159 = vmatmul.mubr.f32.gmra.mxu0 %v92
    %v160 = vpop.f32.mrf.mxu0
    %v161 = vadd.f32 %v88, %v160
    %v162 = vpop.f32.mrf.mxu0
    %163 = vdwg.mxu0
    %v164 = vld [vmem:[#allocation5] sm:$0xff]
    %v165 = vld [vmem:[#allocation8] sm:$0xff]
    %v166 = vld [vmem:[#allocation8 + $0x8] sm:$0xff]
    %v167 = vld [vmem:[#allocation8 + $0x10] sm:$0xff]
    %v168 = vld [vmem:[#allocation8 + $0x18] sm:$0xff]
    %v169 = vld [vmem:[%s5] sm:$0x1]
    %v171 = vlaneseq
    %v172 = vshrl.u32 %v171, 7
    %v173 = vsub.s32 0, %v172
    %v174 = vrot.slane %v169, %v173
    %v177 = vsel %vm90, %v164, 0
    %179 = vmatprep.subr.mxu0 0.0
    %180 = vmatpush1.msra.mxu0 0.0
    %181 = vmatprep.subr.mxu0 0.0
    %182 = vmatpush1.msra.mxu0 0.0
    %183 = vmatprep.subr.mxu0 0.0
    %184 = vmatpush1.msra.mxu0 0.0
    %185 = vmatprep.subr.mxu0 0.0
    %186 = vmatpush1.msra.mxu0 0.0
    %187 = vmatprep.subr.mxu0 0.0
    %188 = vmatpush1.msra.mxu0 0.0
    %189 = vmatprep.subr.mxu0 0.0
    %190 = vmatpush1.msra.mxu0 0.0
    %191 = vmatprep.subr.mxu0 0.0
    %192 = vmatpush1.msra.mxu0 0.0
    %193 = vmatprep.subr.mxu0 0.0
    %194 = vmatpush1.msra.mxu0 0.0
    %195 = vmatprep.subr.mxu0 0.0
    %196 = vmatpush1.msra.mxu0 0.0
    %197 = vmatprep.subr.mxu0 0.0
    %198 = vmatpush1.msra.mxu0 0.0
    %199 = vmatprep.subr.mxu0 0.0
    %200 = vmatpush1.msra.mxu0 0.0
    %201 = vmatprep.subr.mxu0 0.0
    %202 = vmatpush1.msra.mxu0 0.0
    %203 = vmatprep.subr.mxu0 0.0
    %204 = vmatpush1.msra.mxu0 %v168
    %205 = vmatprep.subr.mxu0 0.0
    %206 = vmatpush1.msra.mxu0 %v167
    %207 = vmatprep.subr.mxu0 0.0
    %208 = vmatpush1.msra.mxu0 %v166
    %209 = vmatprep.subr.mxu0 0.0
    %210 = vmatpush1.msra.mxu0 %v165
    %211 = vmatprep.subr.mxu0 0.0
    %212 = vmatpush2.msra.mxu0 0.0
    %213 = vmatprep.subr.mxu0 0.0
    %214 = vmatpush2.msra.mxu0 0.0
    %215 = vmatprep.subr.mxu0 0.0
    %216 = vmatpush2.msra.mxu0 0.0
    %217 = vmatprep.subr.mxu0 0.0
    %218 = vmatpush2.msra.mxu0 0.0
    %219 = vmatprep.subr.mxu0 0.0
    %220 = vmatpush2.msra.mxu0 0.0
    %221 = vmatprep.subr.mxu0 0.0
    %222 = vmatpush2.msra.mxu0 0.0
    %223 = vmatprep.subr.mxu0 0.0
    %224 = vmatpush2.msra.mxu0 0.0
    %225 = vmatprep.subr.mxu0 0.0
    %226 = vmatpush2.msra.mxu0 0.0
    %227 = vmatprep.subr.mxu0 0.0
    %228 = vmatpush2.msra.mxu0 0.0
    %229 = vmatprep.subr.mxu0 0.0
    %230 = vmatpush2.msra.mxu0 0.0
    %231 = vmatprep.subr.mxu0 0.0
    %232 = vmatpush2.msra.mxu0 0.0
    %233 = vmatprep.subr.mxu0 0.0
    %234 = vmatpush2.msra.mxu0 0.0
    %235 = vmatprep.subr.mxu0 0.0
    %236 = vmatpush2.msra.mxu0 0.0
    %237 = vmatprep.subr.mxu0 0.0
    %238 = vmatpush2.msra.mxu0 0.0
    %239 = vmatprep.subr.mxu0 0.0
    %240 = vmatpush2.msra.mxu0 0.0
    %241 = vmatprep.subr.mxu0 0.0
    %242 = vmatpush2.msra.mxu0 0.0
    %243 = vmatprep.mubr.f32.mxu0 0.0
    %244 = vmatmul.mubr.f32.gmra.mxu0 %v177
    %v245 = vpop.f32.mrf.mxu0
    %v246 = vadd.f32 %v174, %v245
    %v247 = vpop.f32.mrf.mxu0
    %248 = vdwg.mxu0
    %v249 = vmul.f32 %v161, %v246
    %250 = vmatprep.subr.mxu0 0.0
    %251 = vmatpush1.xpose.msra.mxu0 0.0
    %252 = vmatprep.subr.mxu0 0.0
    %253 = vmatpush1.xpose.msra.mxu0 0.0
    %254 = vmatprep.subr.mxu0 0.0
    %255 = vmatpush1.xpose.msra.mxu0 0.0
    %256 = vmatprep.subr.mxu0 0.0
    %257 = vmatpush1.xpose.msra.mxu0 0.0
    %258 = vmatprep.subr.mxu0 0.0
    %259 = vmatpush1.xpose.msra.mxu0 0.0
    %260 = vmatprep.subr.mxu0 0.0
    %261 = vmatpush1.xpose.msra.mxu0 0.0
    %262 = vmatprep.subr.mxu0 0.0
    %263 = vmatpush1.xpose.msra.mxu0 0.0
    %264 = vmatprep.subr.mxu0 0.0
    %265 = vmatpush1.xpose.msra.mxu0 0.0
    %266 = vmatprep.subr.mxu0 0.0
    %267 = vmatpush1.xpose.msra.mxu0 0.0
    %268 = vmatprep.subr.mxu0 0.0
    %269 = vmatpush1.xpose.msra.mxu0 0.0
    %270 = vmatprep.subr.mxu0 0.0
    %271 = vmatpush1.xpose.msra.mxu0 0.0
    %272 = vmatprep.subr.mxu0 0.0
    %273 = vmatpush1.xpose.msra.mxu0 0.0
    %274 = vmatprep.subr.mxu0 0.0
    %275 = vmatpush1.xpose.msra.mxu0 0.0
    %276 = vmatprep.subr.mxu0 0.0
    %277 = vmatpush1.xpose.msra.mxu0 0.0
    %278 = vmatprep.subr.mxu0 0.0
    %279 = vmatpush1.xpose.msra.mxu0 0.0
    %280 = vmatprep.subr.mxu0 0.0
    %281 = vmatpush1.xpose.msra.mxu0 %v249
    %282 = vmatprep.subr.mxu0 0.0
    %283 = vmatpush2.xpose.msra.mxu0 0.0
    %284 = vmatprep.subr.mxu0 0.0
    %285 = vmatpush2.xpose.msra.mxu0 0.0
    %286 = vmatprep.subr.mxu0 0.0
    %287 = vmatpush2.xpose.msra.mxu0 0.0
    %288 = vmatprep.subr.mxu0 0.0
    %289 = vmatpush2.xpose.msra.mxu0 0.0
    %290 = vmatprep.subr.mxu0 0.0
    %291 = vmatpush2.xpose.msra.mxu0 0.0
    %292 = vmatprep.subr.mxu0 0.0
    %293 = vmatpush2.xpose.msra.mxu0 0.0
    %294 = vmatprep.subr.mxu0 0.0
    %295 = vmatpush2.xpose.msra.mxu0 0.0
    %296 = vmatprep.subr.mxu0 0.0
    %297 = vmatpush2.xpose.msra.mxu0 0.0
    %298 = vmatprep.subr.mxu0 0.0
    %299 = vmatpush2.xpose.msra.mxu0 0.0
    %300 = vmatprep.subr.mxu0 0.0
    %301 = vmatpush2.xpose.msra.mxu0 0.0
    %302 = vmatprep.subr.mxu0 0.0
    %303 = vmatpush2.xpose.msra.mxu0 0.0
    %304 = vmatprep.subr.mxu0 0.0
    %305 = vmatpush2.xpose.msra.mxu0 0.0
    %306 = vmatprep.subr.mxu0 0.0
    %307 = vmatpush2.xpose.msra.mxu0 0.0
    %308 = vmatprep.subr.mxu0 0.0
    %309 = vmatpush2.xpose.msra.mxu0 0.0
    %310 = vmatprep.subr.mxu0 0.0
    %311 = vmatpush2.xpose.msra.mxu0 0.0
    %312 = vmatprep.subr.mxu0 0.0
    %313 = vmatpush2.xpose.msra.mxu0 0.0
    %314 = vmatprep.mubr.f32.mxu0 0.0
    %315 = vmatmul.mubr.f32.gmra.mxu0 1.0
    %v316 = vpop.f32.mrf.mxu0
    %v317 = vadd.f32 0.0, %v316
    %v318 = vpop.f32.mrf.mxu0
    %319 = vdwg.mxu0
    %v320 = vld [vmem:[%s6] sm:$0x1]
    %v321 = vlaneseq
    %v322 = vand.u32 %v321, 127
    %s323 = smul.u32 0, 8
    %v324 = vstv %s323
    %v325 = vadd.s32 %v324, %v322
    %vm326 = vcmp.lt.s32.totalorder %v325, 8
    %v327 = vmax.f32 %v317, 0.0
    %v328 = vmul.f32 %v317, %v320
    %v329 = vsub.f32 %v327, %v328
    %v330 = vand.u32 2147483647, %v317
    %v331 = vsub.f32 0.0, %v330
    %v332 = vmul.f32 %v331, 1.442695
    %v333 = vpow.pop %v332
    %v334 = vadd.f32 %v333, 1.0
    %v335 = vlog2.pop %v334
    %v336 = vmul.f32 %v335, 0.6931472
    %v337 = vmul.f32 -0.5, %v333
    %v338 = vadd.f32 %v337, 1.0
    %v339 = vmul.f32 %v338, %v333
    %v340 = vand.u32 2147483647, %v333
    %vm341 = vcmp.lt.f32.partialorder %v340, 0.0004427343
    %v342 = vsel %vm341, %v339, %v336
    %v343 = vadd.f32 %v329, %v342
    %v344 = vsel %vm326, %v343, 0.0
    %vm345 = vcmask 57344
    %v346 = vsel %vm345, %v344, 0.0
    %347 = vadd.xlane.f32.xlu0 %v346
    %v348 = vpop.xlane.xlu0 %347
    %v349 = vrot.slane %v348, 4
    %v350 = vadd.f32 %v348, %v349
    %v351 = vrot.slane %v350, 2
    %v352 = vadd.f32 %v350, %v351
    %v353 = vrot.slane %v352, 1
    %v354 = vadd.f32 %v352, %v353
    %s355 = vtos %v354
    %v356 = vstv %s355
    %vm357 = vcmask 0
    %358 = vst.msk [vmem:[#allocation10] sm:$0x1] %vm357, %v356
    // Predicated region
    $region46: #{tpu_custom_call.1} parent=1 // pred_check
      _
    $region47: #{tpu_custom_call.1} parent=1 // pred_check_branch
      %360 = sbr.rel (0) target = $region49
    $region48: #{tpu_custom_call.1} parent=1 // pred_region
      %s362 = ssub.s32 16, 16
      %363 = vsyncadd [#allocation4], %s362
      %s365 = sshll.u32 [#allocation10], 4
      %s366 = int_to_ptr.vmem [resolvable:$true] %s365
      %368 = dma.vmem_to_hbm [thread:$0]  %s366, 16, %s7, [#allocation4]
    $region49: #{tpu_custom_call.1} parent=1 // pred_fallthru
      _
    // Predicated region
    $region50: #{tpu_custom_call.1} parent=1 // pred_check
      _
    $region51: #{tpu_custom_call.1} parent=1 // pred_check_branch
      %370 = sbr.rel (0) target = $region53
    $region52: #{tpu_custom_call.1} parent=1 // pred_region
      %371 = dma.done [#allocation4], 16
    $region53: #{tpu_custom_call.1} parent=1 // pred_fallthru
      _
    %372 = vsyncpa [#allocation3], 1
    %373 = vsyncpa [#allocation6], 1
    %374 = vsyncpa [#allocation9], 1
    %375 = vsyncpa [#allocation4], 1

</llo_original>
